<compile_context>
chip_gen: v7x
topology: tpu7x:2x2x1
jax: 0.10.0
libtpu: 0.0.40
codegen_flags: <defaults>
</compile_context>

<pallas_src>
from functools import partial

import jax
import jax.numpy as jnp
from jax import lax
from jax.experimental import pallas as pl
from jax.experimental.pallas import tpu as pltpu


def _round_up(x, m):
    return ((x + m - 1) // m) * m


def _physical_vmem_bytes():
    """Per-core physical VMEM; conservative 64 MiB (v7x-class) fallback."""
    try:
        info = pltpu.get_tpu_info()
        for attr in ("vmem_capacity_bytes", "vmem_size_bytes", "vmem_bytes"):
            v = getattr(info, attr, None)
            if v:
                return int(v)
    except Exception:
        pass
    return 64 << 20


def _vmem_budget():
    """Tile-sizing budget (bytes) derived from the chip generation."""
    phys = _physical_vmem_bytes()
    if phys <= (64 << 20):
        # v7x-class: 64 MiB physical -> keep double-buffered tiles +
        # intermediates under ~40 MiB.
        return 40 << 20
    # v5e / v6e class: 128 MiB physical.
    return 96 << 20


def _vmem_limit(required_bytes, budget):
    """Explicit scoped-VMEM limit: generous vs. our estimate, under physical."""
    return int(min(max(2 * required_bytes + (4 << 20), 16 << 20),
                   budget + (8 << 20)))


# ---------------------------------------------------------------------------
# Kernels
# ---------------------------------------------------------------------------

def _make_chain_kernel(depth, compute_dtype):
    """out_tile = W_depth @ ... @ W_1 @ x_tile^T  (batch on lane axis, f32 acc)."""

    def kernel(*refs):
        x_ref = refs[0]                      # [bm, n_in]   (batch-major tile)
        w_refs = refs[1:1 + depth]           # W_i: [f_out, f_in] (torch layout)
        o_ref = refs[1 + depth]              # [n_out, bm]  (lane-dense)
        x = x_ref[...]
        if compute_dtype is not None:
            x = x.astype(compute_dtype)
        # First layer contracts x's last axis directly: the n_in x bm relayout
        # happens inside the kernel (idle XLU/MXU slots) instead of as a
        # separate host-side HBM pass over X.
        h = lax.dot_general(w_refs[0][...], x,
                            dimension_numbers=(((1,), (1,)), ((), ())),
                            preferred_element_type=jnp.float32)   # [f_out0, bm]
        for w_ref in w_refs[1:]:
            hc = h if compute_dtype is None else h.astype(compute_dtype)
            h = jnp.dot(w_ref[...], hc, preferred_element_type=jnp.float32)
        o_ref[...] = h.astype(o_ref.dtype)

    return kernel


def _make_block_diag_kernel(compute_dtype):
    """Batch-major collapsed path: [bm_rows, g*n_in] @ [g*n_in, g*n_out]."""

    def kernel(x_ref, w_ref, o_ref):
        x = x_ref[...]
        if compute_dtype is not None:
            x = x.astype(compute_dtype)
        o_ref[...] = jnp.dot(x, w_ref[...],
                             preferred_element_type=jnp.float32
                             ).astype(o_ref.dtype)

    return kernel


# ---------------------------------------------------------------------------
# Host-side paths
# ---------------------------------------------------------------------------

def _chain_forward(x, weights, bm, budget, out_dtype, compute_dtype,
                   transpose_output):
    B, n_in = x.shape
    n_out = weights[-1].shape[0]
    depth = len(weights)

    w_dtype = compute_dtype if compute_dtype is not None else x.dtype
    weights = [w.astype(w_dtype) for w in weights]

    x_isz = jnp.dtype(x.dtype).itemsize
    o_isz = jnp.dtype(out_dtype).itemsize
    w_isz = jnp.dtype(w_dtype).itemsize
    f_outs = [int(w.shape[0]) for w in weights]

    # VMEM bytes per batch column: double-buffered in/out tiles + f32 depth
    # intermediates (+ a transposed f32 copy of x, conservatively).  Weights
    # use constant index maps so at most one extra buffer exists; count 2x.
    per_col = 2 * n_in * x_isz + 2 * n_out * o_isz + 4 * (n_in + sum(f_outs))
    w_resident = 2 * sum(int(w.size) for w in weights) * w_isz
    usable = max(budget - w_resident - (2 << 20), 1 << 20)

    bm_vmem = max((usable // per_col) // 128 * 128, 128)
    bm_eff = max(min(bm, bm_vmem) // 128 * 128, 128)
    bm_eff = min(bm_eff, _round_up(B, 128))
    if B > 128:
        # Keep >= 2 grid steps so both v7x TensorCores / the pipeline have work.
        bm_eff = min(bm_eff, max(_round_up(-(-B // 2), 128), 128))
    b_pad = _round_up(B, bm_eff)

    xp = x if b_pad == B else jnp.pad(x, ((0, b_pad - B), (0, 0)))
    grid = (b_pad // bm_eff,)

    in_specs = [pl.BlockSpec((bm_eff, n_in), lambda i: (i, 0))]
    for w in weights:
        # Full-array block, constant index map -> weight stays resident in VMEM.
        in_specs.append(pl.BlockSpec(w.shape, lambda i: (0, 0)))
    out_spec = pl.BlockSpec((n_out, bm_eff), lambda i: (0, i))

    flops = 2 * b_pad * sum(int(w.shape[0]) * int(w.shape[1]) for w in weights)
    bytes_accessed = (b_pad * (n_in * x_isz + n_out * o_isz)
                      + sum(int(w.size) for w in weights) * w_isz)
    cost = pl.CostEstimate(flops=int(flops), transcendentals=0,
                           bytes_accessed=int(bytes_accessed))

    required = bm_eff * per_col + w_resident
    out_t = pl.pallas_call(
        _make_chain_kernel(depth, compute_dtype),
        out_shape=jax.ShapeDtypeStruct((n_out, b_pad), out_dtype),
        grid=grid,
        in_specs=in_specs,
        out_specs=out_spec,
        compiler_params=pltpu.CompilerParams(
            dimension_semantics=("parallel",),
            vmem_limit_bytes=_vmem_limit(required, budget)),
        cost_estimate=cost,
    )(xp, *weights)

    out_t = out_t[:, :B]
    return out_t.T if transpose_output else out_t


def _block_diag_forward(x, w_eff, g, bm, budget, out_dtype, compute_dtype):
    B, n_in = x.shape
    n_out = w_eff.shape[0]
    w_dtype = compute_dtype if compute_dtype is not None else x.dtype

    # [g*n_in, g*n_out] block-diagonal of g copies of W_eff^T: batch-major
    # matmul with 128-wide lane-dense loads/stores, zero transposes anywhere.
    w_bd = jnp.kron(jnp.eye(g, dtype=jnp.float32),
                    w_eff.T.astype(jnp.float32)).astype(w_dtype)

    x_isz = jnp.dtype(x.dtype).itemsize
    o_isz = jnp.dtype(out_dtype).itemsize
    per_row = 2 * g * n_in * x_isz + 2 * g * n_out * o_isz + 4 * g * n_out
    w_resident = 2 * int(w_bd.size) * jnp.dtype(w_dtype).itemsize
    usable = max(budget - w_resident - (2 << 20), 1 << 20)

    rows_total = -(-B // g)
    bm_rows_vmem = max((usable // per_row) // 8 * 8, 8)
    bm_rows = max(min(max(bm // g, 8), bm_rows_vmem) // 8 * 8, 8)
    bm_rows = min(bm_rows, _round_up(rows_total, 8))
    if rows_total > 8:
        bm_rows = min(bm_rows, max(_round_up(-(-rows_total // 2), 8), 8))
    rows_pad = _round_up(rows_total, bm_rows)
    b_pad = rows_pad * g

    xp = x if b_pad == B else jnp.pad(x, ((0, b_pad - B), (0, 0)))
    x_r = xp.reshape(rows_pad, g * n_in)          # contiguous, zero-copy reshape

    grid = (rows_pad // bm_rows,)
    cost = pl.CostEstimate(
        flops=int(2 * rows_pad * (g * n_in) * (g * n_out)),
        transcendentals=0,
        bytes_accessed=int(rows_pad * g * (n_in * x_isz + n_out * o_isz)
                           + int(w_bd.size) * jnp.dtype(w_dtype).itemsize))

    required = bm_rows * per_row + w_resident
    out_r = pl.pallas_call(
        _make_block_diag_kernel(compute_dtype),
        out_shape=jax.ShapeDtypeStruct((rows_pad, g * n_out), out_dtype),
        grid=grid,
        in_specs=[pl.BlockSpec((bm_rows, g * n_in), lambda i: (i, 0)),
                  pl.BlockSpec(w_bd.shape, lambda i: (0, 0))],
        out_specs=pl.BlockSpec((bm_rows, g * n_out), lambda i: (i, 0)),
        compiler_params=pltpu.CompilerParams(
            dimension_semantics=("parallel",),
            vmem_limit_bytes=_vmem_limit(required, budget)),
        cost_estimate=cost,
    )(x_r, w_bd)

    return out_r.reshape(b_pad, n_out)[:B]


@partial(jax.jit,
         static_argnames=("bm", "use_bf16", "collapse_weights",
                          "transpose_output"))
def deep_linear_forward(x, weights, *, bm=32768, use_bf16=False,
                        collapse_weights=False, transpose_output=True):
    """Fused Deep_Linear.forward.

    x: [B, n_in]; weights[i]: [f_out, f_in] (torch.nn.Linear.weight layout).
    Returns [B, n_out] (or lane-dense [n_out, B] when transpose_output=False),
    numerically matching x @ W1.T @ ... @ Wdepth.T.
    """
    B, n_in = x.shape
    n_out = weights[-1].shape[0]
    out_dtype = x.dtype
    compute_dtype = jnp.bfloat16 if use_bf16 else None
    budget = _vmem_budget()

    if collapse_weights:
        # Pure-inference shortcut: W_eff = W_depth @ ... @ W_1  ([n_out, n_in]).
        w_eff = weights[0].astype(jnp.float32)
        for w in weights[1:]:
            w_eff = w.astype(jnp.float32) @ w_eff
        g = 128 // n_in if 128 % n_in == 0 else 0
        if g > 1 and (g * n_out) % 128 == 0:
            out = _block_diag_forward(x, w_eff, g, bm, budget, out_dtype,
                                      compute_dtype)
            return out if transpose_output else out.T
        weights = [w_eff]

    return _chain_forward(x, weights, bm, budget, out_dtype, compute_dtype,
                          transpose_output)


def init_deep_linear_weights(key, n_in, n_out, n_feature, depth, wide=False,
                             init_scale=1.0):
    """Deterministic 'gaussian' init from Deep_Linear.init_weights:
       std_i = init_scale**(1/depth) * fan_in_i**(-0.5)."""
    n_hidden = n_in if wide else n_feature
    layers = [n_in] + [n_hidden] * (depth - 1) + [n_out]
    keys = jax.random.split(key, depth)
    weights = []
    for i, (f_in, f_out) in enumerate(zip(layers, layers[1:])):
        std = (init_scale ** (1.0 / depth)) * (f_in ** -0.5)
        weights.append(std * jax.random.normal(keys[i], (f_out, f_in),
                                               dtype=jnp.float32))
    return weights


if __name__ == "__main__":
    # Small config consistent with the module: depth=3, wide=False,
    # n_in=16, n_out=16, n_feature=8  -> layer sizes [16, 8, 8, 16].
    n_in, n_out, n_feature, depth = 16, 16, 8, 3
    B = 16  # rows of X

    key = jax.random.PRNGKey(0)
    k_x, k_w = jax.random.split(key)

    x = jax.random.normal(k_x, (B, n_in), dtype=jnp.float32) / jnp.sqrt(n_in)
    weights = init_deep_linear_weights(
        k_w, n_in, n_out, n_feature, depth, wide=False, init_scale=1.0)

    # Pure-JAX reference for the same forward pass.
    ref = x
    for w in weights:
        ref = ref @ w.T

    # Default path: full multi-layer chain inside the kernel, [B, n_out] out.
    out = jax.block_until_ready(deep_linear_forward(x, weights))
    assert out.shape == (B, n_out)
    assert jnp.allclose(out, ref, atol=1e-5, rtol=1e-5)

    # Lane-dense [n_out, B] output for consumers that fuse the transpose.
    out_t = jax.block_until_ready(
        deep_linear_forward(x, weights, transpose_output=False))
    assert out_t.shape == (n_out, B)
    assert jnp.allclose(out_t.T, ref, atol=1e-5, rtol=1e-5)

    # Collapsed block-diagonal inference path (mathematically identical fwd).
    out_c = jax.block_until_ready(
        deep_linear_forward(x, weights, collapse_weights=True))
    assert out_c.shape == (B, n_out)
    assert jnp.allclose(out_c, ref, atol=1e-4, rtol=1e-4)

    print("KERNEL_OK")
</pallas_src>

<mosaic_0001>
module attributes {stable_mosaic.version = 11 : i64} {
  func.func @kernel(%arg0: i32, %arg1: memref<128x16xf32, #tpu.memory_space<vmem>>, %arg2: memref<8x16xf32, #tpu.memory_space<vmem>>, %arg3: memref<8x8xf32, #tpu.memory_space<vmem>>, %arg4: memref<16x8xf32, #tpu.memory_space<vmem>>, %arg5: memref<16x128xf32, #tpu.memory_space<vmem>>) attributes {dimension_semantics = [#tpu.dimension_semantics<parallel>], iteration_bounds = array<i64: 1>, scalar_prefetch = 0 : i64, scratch_operands = 0 : i64, tpu.core_type = #tpu.core_type<tc>, window_params = [{transform_indices = @transform_0, window_bounds = array<i64: 128, 16>}, {pipeline_mode = #tpu.pipeline_mode<synchronous>, transform_indices = @transform_1, window_bounds = array<i64: 8, 16>}, {pipeline_mode = #tpu.pipeline_mode<synchronous>, transform_indices = @transform_2, window_bounds = array<i64: 8, 8>}, {pipeline_mode = #tpu.pipeline_mode<synchronous>, transform_indices = @transform_3, window_bounds = array<i64: 16, 8>}, {transform_indices = @transform_4, window_bounds = array<i64: 16, 128>}]} {
    %c0 = arith.constant 0 : index
    %c0_0 = arith.constant 0 : index
    %0 = vector.load %arg1[%c0, %c0_0] : memref<128x16xf32, #tpu.memory_space<vmem>>, vector<128x16xf32>
    %c0_1 = arith.constant 0 : index
    %c0_2 = arith.constant 0 : index
    %1 = vector.load %arg2[%c0_1, %c0_2] : memref<8x16xf32, #tpu.memory_space<vmem>>, vector<8x16xf32>
    %cst = arith.constant dense<0.000000e+00> : vector<8x128xf32>
    %2 = tpu.matmul %1, %0, %cst {dimension_numbers = #tpu.dot_dimension_numbers<[1], [1], [0], [0], [0, 0, 1, 0], [], []>} : vector<8x16xf32>, vector<128x16xf32>, vector<8x128xf32> -> vector<8x128xf32>
    %c0_3 = arith.constant 0 : index
    %c0_4 = arith.constant 0 : index
    %3 = vector.load %arg3[%c0_3, %c0_4] : memref<8x8xf32, #tpu.memory_space<vmem>>, vector<8x8xf32>
    %cst_5 = arith.constant dense<0.000000e+00> : vector<8x128xf32>
    %4 = tpu.matmul %3, %2, %cst_5 {dimension_numbers = #tpu.dot_dimension_numbers<[1], [0], [0], [1], [0, 0, 1, 1], [], []>} : vector<8x8xf32>, vector<8x128xf32>, vector<8x128xf32> -> vector<8x128xf32>
    %c0_6 = arith.constant 0 : index
    %c0_7 = arith.constant 0 : index
    %5 = vector.load %arg4[%c0_6, %c0_7] : memref<16x8xf32, #tpu.memory_space<vmem>>, vector<16x8xf32>
    %cst_8 = arith.constant dense<0.000000e+00> : vector<16x128xf32>
    %6 = tpu.matmul %5, %4, %cst_8 {dimension_numbers = #tpu.dot_dimension_numbers<[1], [0], [0], [1], [0, 0, 1, 1], [], []>} : vector<16x8xf32>, vector<8x128xf32>, vector<16x128xf32> -> vector<16x128xf32>
    %c0_9 = arith.constant 0 : index
    %c0_10 = arith.constant 0 : index
    %7 = vector.load %arg5[%c0_9, %c0_10] : memref<16x128xf32, #tpu.memory_space<vmem>>, vector<16x128xf32>
    tpu.vector_store %arg5[%c0_9, %c0_10], %6 {strides = array<i32>} : memref<16x128xf32, #tpu.memory_space<vmem>>, vector<16x128xf32>,
    return
  }
  func.func @transform_0(%arg0: i32) -> (i32, i32) {
    %c0_i32 = arith.constant 0 : i32
    %c0_i32_0 = arith.constant 0 : i32
    return %arg0, %c0_i32 : i32, i32
  }
  func.func @transform_1(%arg0: i32) -> (i32, i32) {
    %c0_i32 = arith.constant 0 : i32
    %c0_i32_0 = arith.constant 0 : i32
    %c0_i32_1 = arith.constant 0 : i32
    return %c0_i32, %c0_i32_0 : i32, i32
  }
  func.func @transform_2(%arg0: i32) -> (i32, i32) {
    %c0_i32 = arith.constant 0 : i32
    %c0_i32_0 = arith.constant 0 : i32
    %c0_i32_1 = arith.constant 0 : i32
    return %c0_i32, %c0_i32_0 : i32, i32
  }
  func.func @transform_3(%arg0: i32) -> (i32, i32) {
    %c0_i32 = arith.constant 0 : i32
    %c0_i32_0 = arith.constant 0 : i32
    %c0_i32_1 = arith.constant 0 : i32
    return %c0_i32, %c0_i32_0 : i32, i32
  }
  func.func @transform_4(%arg0: i32) -> (i32, i32) {
    %c0_i32 = arith.constant 0 : i32
    %c0_i32_0 = arith.constant 0 : i32
    return %c0_i32, %arg0 : i32, i32
  }
}

</mosaic_0001>

<llo_original>
// kernel: deep_linear_forward.1
$region0: #{deep_linear_forward.1}
  #allocation0 [shape = 'u32[]', space=smem, size = 0x4, offset = 0x4, fixed_abs, tag = 'smem constant byte address 0x4 - core index']
  #allocation1 [shape = 'u32[144,128]{1,0:T(1,128)}', space=vmem, size = 0x12000, scoped, tag = 'internal scratch']
  %s0 = inlined_call_operand.vmem [shape: f32[128,16], index: 0, kind: input, shape index: {}]
  %s1 = inlined_call_operand.vmem [shape: f32[8,16], index: 1, kind: input, shape index: {}]
  %s2 = inlined_call_operand.vmem [shape: f32[8,8], index: 2, kind: input, shape index: {}]
  %s3 = inlined_call_operand.vmem [shape: f32[16,8], index: 3, kind: input, shape index: {}]
  %s4 = inlined_call_operand.vmem [shape: f32[16,128], index: 4, kind: output, shape index: {}]
  %s5 = sld [smem:[#allocation0]]
  $region26: #{deep_linear_forward.1} parent=0
    _
  %s7 = ssub.s32 1, %s5
  %s8 = scalar_select 0, %s7, %s5
  // Predicated region
  $region2: #{deep_linear_forward.1} parent=0 // pred_check
    _
  $region3: #{deep_linear_forward.1} parent=0 // pred_check_branch
    %10 = sbr.rel (0) target = $region5
  $region4: #{deep_linear_forward.1} parent=0 // pred_region
    _
  $region5: #{deep_linear_forward.1} parent=0 // pred_fallthru
    _
  // Predicated region
  $region6: #{deep_linear_forward.1} parent=0 // pred_check
    _
  $region7: #{deep_linear_forward.1} parent=0 // pred_check_branch
    %12 = sbr.rel (0) target = $region9
  $region8: #{deep_linear_forward.1} parent=0 // pred_region
    _
  $region9: #{deep_linear_forward.1} parent=0 // pred_fallthru
    _
  // Predicated region
  $region10: #{deep_linear_forward.1} parent=0 // pred_check
    _
  $region11: #{deep_linear_forward.1} parent=0 // pred_check_branch
    %14 = sbr.rel (0) target = $region13
  $region12: #{deep_linear_forward.1} parent=0 // pred_region
    _
  $region13: #{deep_linear_forward.1} parent=0 // pred_fallthru
    _
  // Predicated region
  $region14: #{deep_linear_forward.1} parent=0 // pred_check
    _
  $region15: #{deep_linear_forward.1} parent=0 // pred_check_branch
    %16 = sbr.rel (0) target = $region17
  $region16: #{deep_linear_forward.1} parent=0 // pred_region
    _
  $region17: #{deep_linear_forward.1} parent=0 // pred_fallthru
    _
  %v17 = vld [vmem:[%s0] sm:$0xff]
  %v18 = vld [vmem:[%s0 + $0x8] sm:$0xff]
  %v19 = vld [vmem:[%s0 + $0x10] sm:$0xff]
  %v20 = vld [vmem:[%s0 + $0x18] sm:$0xff]
  %v21 = vld [vmem:[%s0 + $0x20] sm:$0xff]
  %v22 = vld [vmem:[%s0 + $0x28] sm:$0xff]
  %v23 = vld [vmem:[%s0 + $0x30] sm:$0xff]
  %v24 = vld [vmem:[%s0 + $0x38] sm:$0xff]
  %v25 = vld [vmem:[%s0 + $0x40] sm:$0xff]
  %v26 = vld [vmem:[%s0 + $0x48] sm:$0xff]
  %v27 = vld [vmem:[%s0 + $0x50] sm:$0xff]
  %v28 = vld [vmem:[%s0 + $0x58] sm:$0xff]
  %v29 = vld [vmem:[%s0 + $0x60] sm:$0xff]
  %v30 = vld [vmem:[%s0 + $0x68] sm:$0xff]
  %v31 = vld [vmem:[%s0 + $0x70] sm:$0xff]
  %v32 = vld [vmem:[%s0 + $0x78] sm:$0xff]
  %v33 = vld [vmem:[%s1] sm:$0xff]
  %vm34 = vcmask 130048
  %v36 = vsel %vm34, %v33, 0
  %v39 = vsel %vm34, %v17, 0
  %v42 = vsel %vm34, %v18, 0
  %v45 = vsel %vm34, %v19, 0
  %v48 = vsel %vm34, %v20, 0
  %v51 = vsel %vm34, %v21, 0
  %v54 = vsel %vm34, %v22, 0
  %v57 = vsel %vm34, %v23, 0
  %v60 = vsel %vm34, %v24, 0
  %v63 = vsel %vm34, %v25, 0
  %v66 = vsel %vm34, %v26, 0
  %v69 = vsel %vm34, %v27, 0
  %v72 = vsel %vm34, %v28, 0
  %v75 = vsel %vm34, %v29, 0
  %v78 = vsel %vm34, %v30, 0
  %v81 = vsel %vm34, %v31, 0
  %v84 = vsel %vm34, %v32, 0
  %86 = vmatprep.subr.mxu0 0.0
  %87 = vmatpush1.xpose.msra.mxu0 %v39
  %88 = vmatprep.subr.mxu0 0.0
  %89 = vmatpush1.xpose.msra.mxu0 %v42
  %90 = vmatprep.subr.mxu0 0.0
  %91 = vmatpush1.xpose.msra.mxu0 %v45
  %92 = vmatprep.subr.mxu0 0.0
  %93 = vmatpush1.xpose.msra.mxu0 %v48
  %94 = vmatprep.subr.mxu0 0.0
  %95 = vmatpush1.xpose.msra.mxu0 %v51
  %96 = vmatprep.subr.mxu0 0.0
  %97 = vmatpush1.xpose.msra.mxu0 %v54
  %98 = vmatprep.subr.mxu0 0.0
  %99 = vmatpush1.xpose.msra.mxu0 %v57
  %100 = vmatprep.subr.mxu0 0.0
  %101 = vmatpush1.xpose.msra.mxu0 %v60
  %102 = vmatprep.subr.mxu0 0.0
  %103 = vmatpush1.xpose.msra.mxu0 %v63
  %104 = vmatprep.subr.mxu0 0.0
  %105 = vmatpush1.xpose.msra.mxu0 %v66
  %106 = vmatprep.subr.mxu0 0.0
  %107 = vmatpush1.xpose.msra.mxu0 %v69
  %108 = vmatprep.subr.mxu0 0.0
  %109 = vmatpush1.xpose.msra.mxu0 %v72
  %110 = vmatprep.subr.mxu0 0.0
  %111 = vmatpush1.xpose.msra.mxu0 %v75
  %112 = vmatprep.subr.mxu0 0.0
  %113 = vmatpush1.xpose.msra.mxu0 %v78
  %114 = vmatprep.subr.mxu0 0.0
  %115 = vmatpush1.xpose.msra.mxu0 %v81
  %116 = vmatprep.subr.mxu0 0.0
  %117 = vmatpush1.xpose.msra.mxu0 %v84
  %118 = vmatprep.subr.mxu0 0.0
  %119 = vmatpush1.xpose.msra.mxu0 0.0
  %120 = vmatprep.subr.mxu0 0.0
  %121 = vmatpush1.xpose.msra.mxu0 0.0
  %122 = vmatprep.subr.mxu0 0.0
  %123 = vmatpush1.xpose.msra.mxu0 0.0
  %124 = vmatprep.subr.mxu0 0.0
  %125 = vmatpush1.xpose.msra.mxu0 0.0
  %126 = vmatprep.subr.mxu0 0.0
  %127 = vmatpush1.xpose.msra.mxu0 0.0
  %128 = vmatprep.subr.mxu0 0.0
  %129 = vmatpush1.xpose.msra.mxu0 0.0
  %130 = vmatprep.subr.mxu0 0.0
  %131 = vmatpush1.xpose.msra.mxu0 0.0
  %132 = vmatprep.subr.mxu0 0.0
  %133 = vmatpush1.xpose.msra.mxu0 0.0
  %134 = vmatprep.subr.mxu0 0.0
  %135 = vmatpush1.xpose.msra.mxu0 0.0
  %136 = vmatprep.subr.mxu0 0.0
  %137 = vmatpush1.xpose.msra.mxu0 0.0
  %138 = vmatprep.subr.mxu0 0.0
  %139 = vmatpush1.xpose.msra.mxu0 0.0
  %140 = vmatprep.subr.mxu0 0.0
  %141 = vmatpush1.xpose.msra.mxu0 0.0
  %142 = vmatprep.subr.mxu0 0.0
  %143 = vmatpush1.xpose.msra.mxu0 0.0
  %144 = vmatprep.subr.mxu0 0.0
  %145 = vmatpush1.xpose.msra.mxu0 0.0
  %146 = vmatprep.subr.mxu0 0.0
  %147 = vmatpush1.xpose.msra.mxu0 0.0
  %148 = vmatprep.subr.mxu0 0.0
  %149 = vmatpush1.xpose.msra.mxu0 0.0
  %150 = vmatprep.mubr.f32.mxu0 0.0
  %151 = vmatmul.mubr.f32.gmra.mrb[0].mxu0 %v36
  %v152 = vpop.f32.mrb[0].mxu0
  %v153 = vadd.f32 0.0, %v152
  %v154 = vpop.f32.mrb[0].mxu0
  %155 = vdwg.mxu0
  %v156 = vld [vmem:[%s2] sm:$0xff]
  %vm157 = vcmask 64512
  %v159 = vsel %vm157, %v156, 0
  %161 = vmatprep.subr.mxu0 0.0
  %162 = vmatpush1.msra.mxu0 %v153
  %163 = vmatprep.subr.mxu0 0.0
  %164 = vmatpush1.msra.mxu0 0.0
  %165 = vmatprep.subr.mxu0 0.0
  %166 = vmatpush1.msra.mxu0 0.0
  %167 = vmatprep.subr.mxu0 0.0
  %168 = vmatpush1.msra.mxu0 0.0
  %169 = vmatprep.subr.mxu0 0.0
  %170 = vmatpush1.msra.mxu0 0.0
  %171 = vmatprep.subr.mxu0 0.0
  %172 = vmatpush1.msra.mxu0 0.0
  %173 = vmatprep.subr.mxu0 0.0
  %174 = vmatpush1.msra.mxu0 0.0
  %175 = vmatprep.subr.mxu0 0.0
  %176 = vmatpush1.msra.mxu0 0.0
  %177 = vmatprep.subr.mxu0 0.0
  %178 = vmatpush1.msra.mxu0 0.0
  %179 = vmatprep.subr.mxu0 0.0
  %180 = vmatpush1.msra.mxu0 0.0
  %181 = vmatprep.subr.mxu0 0.0
  %182 = vmatpush1.msra.mxu0 0.0
  %183 = vmatprep.subr.mxu0 0.0
  %184 = vmatpush1.msra.mxu0 0.0
  %185 = vmatprep.subr.mxu0 0.0
  %186 = vmatpush1.msra.mxu0 0.0
  %187 = vmatprep.subr.mxu0 0.0
  %188 = vmatpush1.msra.mxu0 0.0
  %189 = vmatprep.subr.mxu0 0.0
  %190 = vmatpush1.msra.mxu0 0.0
  %191 = vmatprep.subr.mxu0 0.0
  %192 = vmatpush1.msra.mxu0 0.0
  %193 = vmatprep.subr.mxu0 0.0
  %194 = vmatpush1.msra.mxu0 0.0
  %195 = vmatprep.subr.mxu0 0.0
  %196 = vmatpush1.msra.mxu0 0.0
  %197 = vmatprep.subr.mxu0 0.0
  %198 = vmatpush1.msra.mxu0 0.0
  %199 = vmatprep.subr.mxu0 0.0
  %200 = vmatpush1.msra.mxu0 0.0
  %201 = vmatprep.subr.mxu0 0.0
  %202 = vmatpush1.msra.mxu0 0.0
  %203 = vmatprep.subr.mxu0 0.0
  %204 = vmatpush1.msra.mxu0 0.0
  %205 = vmatprep.subr.mxu0 0.0
  %206 = vmatpush1.msra.mxu0 0.0
  %207 = vmatprep.subr.mxu0 0.0
  %208 = vmatpush1.msra.mxu0 0.0
  %209 = vmatprep.subr.mxu0 0.0
  %210 = vmatpush1.msra.mxu0 0.0
  %211 = vmatprep.subr.mxu0 0.0
  %212 = vmatpush1.msra.mxu0 0.0
  %213 = vmatprep.subr.mxu0 0.0
  %214 = vmatpush1.msra.mxu0 0.0
  %215 = vmatprep.subr.mxu0 0.0
  %216 = vmatpush1.msra.mxu0 0.0
  %217 = vmatprep.subr.mxu0 0.0
  %218 = vmatpush1.msra.mxu0 0.0
  %219 = vmatprep.subr.mxu0 0.0
  %220 = vmatpush1.msra.mxu0 0.0
  %221 = vmatprep.subr.mxu0 0.0
  %222 = vmatpush1.msra.mxu0 0.0
  %223 = vmatprep.subr.mxu0 0.0
  %224 = vmatpush1.msra.mxu0 0.0
  %225 = vmatprep.mubr.f32.mxu0 0.0
  %226 = vmatmul.mubr.f32.gmra.mrb[0].mxu0 %v159
  %v227 = vpop.f32.mrb[0].mxu0
  %v228 = vadd.f32 0.0, %v227
  %v229 = vpop.f32.mrb[0].mxu0
  %230 = vdwg.mxu0
  %v231 = vld [vmem:[%s3] sm:$0xff]
  %v232 = vld [vmem:[%s3 + $0x8] sm:$0xff]
  %v234 = vsel %vm157, %v231, 0
  %v237 = vsel %vm157, %v232, 0
  %239 = vmatprep.subr.mxu0 0.0
  %240 = vmatpush1.msra.mxu0 %v228
  %241 = vmatprep.subr.mxu0 0.0
  %242 = vmatpush1.msra.mxu0 0.0
  %243 = vmatprep.subr.mxu0 0.0
  %244 = vmatpush1.msra.mxu0 0.0
  %245 = vmatprep.subr.mxu0 0.0
  %246 = vmatpush1.msra.mxu0 0.0
  %247 = vmatprep.subr.mxu0 0.0
  %248 = vmatpush1.msra.mxu0 0.0
  %249 = vmatprep.subr.mxu0 0.0
  %250 = vmatpush1.msra.mxu0 0.0
  %251 = vmatprep.subr.mxu0 0.0
  %252 = vmatpush1.msra.mxu0 0.0
  %253 = vmatprep.subr.mxu0 0.0
  %254 = vmatpush1.msra.mxu0 0.0
  %255 = vmatprep.subr.mxu0 0.0
  %256 = vmatpush1.msra.mxu0 0.0
  %257 = vmatprep.subr.mxu0 0.0
  %258 = vmatpush1.msra.mxu0 0.0
  %259 = vmatprep.subr.mxu0 0.0
  %260 = vmatpush1.msra.mxu0 0.0
  %261 = vmatprep.subr.mxu0 0.0
  %262 = vmatpush1.msra.mxu0 0.0
  %263 = vmatprep.subr.mxu0 0.0
  %264 = vmatpush1.msra.mxu0 0.0
  %265 = vmatprep.subr.mxu0 0.0
  %266 = vmatpush1.msra.mxu0 0.0
  %267 = vmatprep.subr.mxu0 0.0
  %268 = vmatpush1.msra.mxu0 0.0
  %269 = vmatprep.subr.mxu0 0.0
  %270 = vmatpush1.msra.mxu0 0.0
  %271 = vmatprep.subr.mxu0 0.0
  %272 = vmatpush1.msra.mxu0 0.0
  %273 = vmatprep.subr.mxu0 0.0
  %274 = vmatpush1.msra.mxu0 0.0
  %275 = vmatprep.subr.mxu0 0.0
  %276 = vmatpush1.msra.mxu0 0.0
  %277 = vmatprep.subr.mxu0 0.0
  %278 = vmatpush1.msra.mxu0 0.0
  %279 = vmatprep.subr.mxu0 0.0
  %280 = vmatpush1.msra.mxu0 0.0
  %281 = vmatprep.subr.mxu0 0.0
  %282 = vmatpush1.msra.mxu0 0.0
  %283 = vmatprep.subr.mxu0 0.0
  %284 = vmatpush1.msra.mxu0 0.0
  %285 = vmatprep.subr.mxu0 0.0
  %286 = vmatpush1.msra.mxu0 0.0
  %287 = vmatprep.subr.mxu0 0.0
  %288 = vmatpush1.msra.mxu0 0.0
  %289 = vmatprep.subr.mxu0 0.0
  %290 = vmatpush1.msra.mxu0 0.0
  %291 = vmatprep.subr.mxu0 0.0
  %292 = vmatpush1.msra.mxu0 0.0
  %293 = vmatprep.subr.mxu0 0.0
  %294 = vmatpush1.msra.mxu0 0.0
  %295 = vmatprep.subr.mxu0 0.0
  %296 = vmatpush1.msra.mxu0 0.0
  %297 = vmatprep.subr.mxu0 0.0
  %298 = vmatpush1.msra.mxu0 0.0
  %299 = vmatprep.subr.mxu0 0.0
  %300 = vmatpush1.msra.mxu0 0.0
  %301 = vmatprep.subr.mxu0 0.0
  %302 = vmatpush1.msra.mxu0 0.0
  %303 = vmatprep.mubr.f32.mxu0 0.0
  %304 = vmatmul.mubr.f32.gmra.mrb[0].mxu0 %v234
  %v305 = vpop.f32.mrb[0].mxu0
  %v306 = vadd.f32 0.0, %v305
  %v307 = vpop.f32.mrb[0].mxu0
  %308 = vmatprep.mubr.f32.mxu0 0.0
  %309 = vmatmul.mubr.f32.gmra.mrb[0].mxu0 %v237
  %v310 = vpop.f32.mrb[0].mxu0
  %v311 = vadd.f32 0.0, %v310
  %v312 = vpop.f32.mrb[0].mxu0
  %313 = vdwg.mxu0
  %314 = vst [vmem:[%s4] sm:$0xff] %v306
  %315 = vst [vmem:[%s4 + $0x8] sm:$0xff] %v311
  // Predicated region
  $region18: #{deep_linear_forward.1} parent=0 // pred_check
    _
  $region19: #{deep_linear_forward.1} parent=0 // pred_check_branch
    %317 = sbr.rel (0) target = $region21
  $region20: #{deep_linear_forward.1} parent=0 // pred_region
    _
  $region21: #{deep_linear_forward.1} parent=0 // pred_fallthru
    _
  // Predicated region
  $region22: #{deep_linear_forward.1} parent=0 // pred_check
    _
  $region23: #{deep_linear_forward.1} parent=0 // pred_check_branch
    %319 = sbr.rel (0) target = $region25
  $region24: #{deep_linear_forward.1} parent=0 // pred_region
    _
  $region25: #{deep_linear_forward.1} parent=0 // pred_fallthru
    _

</llo_original>
